<compile_context>
chip_gen: v7x
topology: tpu7x:2x2x1
jax: 0.10.0
libtpu: 0.0.40
codegen_flags: <defaults>
</compile_context>

<pallas_src>
import random
from functools import partial

import jax
import jax.numpy as jnp
import numpy as np
from jax.experimental import pallas as pl
from jax.experimental.pallas import tpu as pltpu


def _round_up(x, m):
    return ((x + m - 1) // m) * m


def _default_tiles():
    """(TN output-pixel lane tile, TK reduction tile) per TPU generation."""
    try:
        kind = jax.devices()[0].device_kind.lower()
    except Exception:  # defensive: never fail tile selection
        kind = ""
    if "v5 lite" in kind or "v5e" in kind or "v5lite" in kind:
        return 128, 1024   # v5e: smaller MXU / HBM BW
    return 256, 2048       # v6e / v7x / default


# ----------------------------- Pallas kernel ---------------------------------
def _rotate_gather_kernel(band_start_ref, band_len_ref, src_ref, x_ref, o_ref,
                          *, tk, single_k, precision):
    """Band-limited one-hot matmul gather; the one-hot is built in-kernel.

    band_start_ref : SMEM (nj,) int32 -- first input K block of tile j's band.
    band_len_ref   : SMEM (nj,) int32 -- band width of tile j, in K blocks (>=1).
    src_ref : (1, 1, TN) int32 -- flat source index per output pixel (-1 = fill 0).
    x_ref   : (TM, TK)         -- image rows, k-th K tile of this tile's band.
    o_ref   : (TM, TN) f32     -- output tile, resident across the K axis.
    """
    j = pl.program_id(1)
    k = pl.program_id(2)

    def gather_dot():
        base = (band_start_ref[j] + k) * tk
        rows = jax.lax.broadcasted_iota(jnp.int32, (tk, o_ref.shape[1]), 0) + base
        # One-hot: s[r, c] = 1 iff output pixel c reads flat input index base+r.
        s = jnp.where(rows == src_ref[0], 1.0, 0.0).astype(x_ref.dtype)
        return jnp.dot(x_ref[...], s,
                       preferred_element_type=jnp.float32,
                       precision=precision)

    if single_k:                       # whole band fits in one K tile
        o_ref[...] = gather_dot()
    else:
        @pl.when(k == 0)
        def _():
            o_ref[...] = jnp.zeros_like(o_ref)

        @pl.when(k < band_len_ref[j])  # skip MXU work past this tile's band
        def _():
            o_ref[...] += gather_dot()


# ------------------- host-side index map / band construction -----------------
def _source_index_map_np(H, W, degree):
    """Flat source index in [0, HW) per output pixel, or -1 if out of bounds.

    Mirrors torchvision F.rotate (NEAREST, expand=False, center=None, fill=0):
      src = R(theta)^-1 about the image center, nearest = round-half-to-even,
      padding_mode="zeros".  Trig in f32.
    """
    theta = np.deg2rad(np.float32(degree))
    cos_t = np.float32(np.cos(theta))
    sin_t = np.float32(np.sin(theta))
    xs = (-W * 0.5 + 0.5 + np.arange(W, dtype=np.float32)).astype(np.float32)
    ys = (-H * 0.5 + 0.5 + np.arange(H, dtype=np.float32)).astype(np.float32)
    X = xs[None, :]
    Y = ys[:, None]
    src_x = cos_t * X - sin_t * Y + np.float32((W - 1) * 0.5)
    src_y = sin_t * X + cos_t * Y + np.float32((H - 1) * 0.5)
    sx = np.round(src_x)  # round-half-to-even, matches nearbyint
    sy = np.round(src_y)
    valid = (sx >= 0) & (sx < W) & (sy >= 0) & (sy < H)
    idx = sy.astype(np.int64) * W + sx.astype(np.int64)
    return np.where(valid, idx, -1).reshape(H * W)          # (HW,)


def _build_band_meta_np(H, W, degree, TN, TK):
    """Per-output-tile source index rows + band (start block, length in blocks)."""
    HW = H * W
    src_idx = _source_index_map_np(H, W, degree)             # (HW,), -1 == fill
    hw_out_pad = _round_up(HW, TN)
    hw_in_pad = _round_up(HW, TK)
    nj = hw_out_pad // TN

    src2 = np.full((nj * TN,), -1, dtype=np.int64)
    src2[:HW] = src_idx                                      # pad cols -> -1
    src2 = src2.reshape(nj, TN)

    valid = src2 >= 0
    any_valid = valid.any(axis=1)
    big = np.iinfo(np.int64).max
    lo = np.where(any_valid, np.where(valid, src2, big).min(axis=1), 0)
    hi = np.where(any_valid, np.where(valid, src2, -1).max(axis=1), 0)
    lo_blk = lo // TK
    hi_blk = hi // TK
    band_len = np.maximum(hi_blk - lo_blk + 1, 1).astype(np.int32)   # (nj,)
    band_start = lo_blk.astype(np.int32)                             # (nj,)
    kb = int(band_len.max())                                 # max band width (blocks)
    src3 = src2.astype(np.int32).reshape(nj, 1, TN)
    return src3, band_start, band_len, kb, hw_in_pad, hw_out_pad


_BAND_CACHE = {}
_BAND_CACHE_MAX = 64     # bounded: entries are only O(HW) int32 now


def _get_band_meta(H, W, degree, TN, TK):
    key = (int(H), int(W), float(degree), int(TN), int(TK))
    hit = _BAND_CACHE.get(key)
    if hit is None:
        src3, bs, bl, kb, hw_in_pad, hw_out_pad = _build_band_meta_np(
            H, W, degree, TN, TK)
        hit = (jnp.asarray(src3), jnp.asarray(bs), jnp.asarray(bl), kb,
               hw_in_pad, hw_out_pad)
        if len(_BAND_CACHE) >= _BAND_CACHE_MAX:
            _BAND_CACHE.pop(next(iter(_BAND_CACHE)))
        _BAND_CACHE[key] = hit
    return hit


# ------------------------------ device wrapper --------------------------------
@partial(jax.jit,
         static_argnames=("tm", "tn", "tk", "m_pad", "hw_in_pad", "hw_out_pad",
                          "kb", "compute_dtype_name"))
def _rotate_padded_call(x, src3, band_start, band_len, *, tm, tn, tk, m_pad,
                        hw_in_pad, hw_out_pad, kb, compute_dtype_name):
    n, c, h, w = x.shape
    m, hw = n * c, h * w
    nj = hw_out_pad // tn
    compute_dtype = jnp.dtype(compute_dtype_name)

    x2 = x.reshape(m, hw)
    if x2.dtype != compute_dtype:
        x2 = x2.astype(compute_dtype)
    if (m_pad, hw_in_pad) != (m, hw):
        x2 = jnp.pad(x2, ((0, m_pad - m), (0, hw_in_pad - hw)))

    # Pin f32 matmul precision so the one-hot gather is bit-exact on every
    # generation; bf16 x bf16 is structurally exact already.
    precision = (jax.lax.Precision.HIGHEST
                 if compute_dtype == jnp.dtype(jnp.float32) else None)

    kernel = partial(_rotate_gather_kernel, tk=tk, single_k=(kb == 1),
                     precision=precision)

    itemsize = compute_dtype.itemsize
    flops = 2 * m_pad * nj * kb * tk * tn
    bytes_accessed = (m_pad * nj * kb * tk * itemsize        # X K-tiles streamed
                      + (m_pad // tm) * nj * tn * 4          # src index rows
                      + m_pad * hw_out_pad * 4)              # output writeback

    out = pl.pallas_call(
        kernel,
        out_shape=jax.ShapeDtypeStruct((m_pad, hw_out_pad), jnp.float32),
        grid_spec=pltpu.PrefetchScalarGridSpec(
            num_scalar_prefetch=2,
            grid=(m_pad // tm, nj, kb),
            in_specs=[
                # Flat-source-index row for this output tile (tiny, int32).
                pl.BlockSpec((1, 1, tn), lambda mi, j, k, bs, bl: (j, 0, 0)),
                # Image rows: k-th K tile inside this tile's source band.
                # Clamp at band_len-1 so out-of-band steps repeat the previous
                # block (no fresh DMA) and the dot is skipped by pl.when.
                pl.BlockSpec(
                    (tm, tk),
                    lambda mi, j, k, bs, bl:
                        (mi, bs[j] + jnp.minimum(k, bl[j] - 1))),
            ],
            out_specs=pl.BlockSpec((tm, tn), lambda mi, j, k, bs, bl: (mi, j)),
        ),
        compiler_params=pltpu.CompilerParams(
            dimension_semantics=("parallel", "parallel", "arbitrary"),
            vmem_limit_bytes=32 * 1024 * 1024,
        ),
        cost_estimate=pl.CostEstimate(
            flops=flops, transcendentals=0, bytes_accessed=bytes_accessed),
    )(band_start, band_len, src3, x2)

    return out[:m, :hw].reshape(n, c, h, w).astype(x.dtype)


def rotate_pallas(x, degree):
    """x: (N, C, H, W) -> rotated (N, C, H, W) (NEAREST, expand=False, fill=0)."""
    N, C, H, W = x.shape
    M, HW = N * C, H * W

    tn_target, tk_target = _default_tiles()
    TN = min(tn_target, _round_up(HW, 128))   # lane-dense output tile
    TK = min(tk_target, _round_up(HW, 128))   # reduction (band) tile
    if M >= 512:
        tm_target = 512
    elif M >= 256:
        tm_target = 256
    else:
        tm_target = 128
    TM = min(tm_target, _round_up(M, 8))      # row tile (multiple of 8 sublanes)
    M_pad = _round_up(M, TM)
    # TODO(synk): on v7x (2 TensorCores) prefer splitting nj / 2D patch tiles
    # when (M_pad // TM) * nj < 2 so both cores get work.

    if x.dtype == jnp.bfloat16:
        compute_dtype_name = "bfloat16"       # exact gather at full bf16 MXU rate
    else:
        compute_dtype_name = "float32"
        # TODO(synk): int8/uint8 inputs could use the int8 MXU path on v5e/v6e
        # (not v7x, whose MXU has no int support); they currently go via f32.

    src3, band_start, band_len, kb, hw_in_pad, hw_out_pad = _get_band_meta(
        H, W, degree, TN, TK)
    return _rotate_padded_call(
        x, src3, band_start, band_len,
        tm=TM, tn=TN, tk=TK, m_pad=M_pad, hw_in_pad=hw_in_pad,
        hw_out_pad=hw_out_pad, kb=kb, compute_dtype_name=compute_dtype_name)


# Pure-JAX reference (same index math, direct gather) for correctness checks.
def rotate_ref(x, degree):
    N, C, H, W = x.shape
    src_idx = jnp.asarray(_source_index_map_np(H, W, degree))
    flat = x.reshape(N, C, H * W).astype(jnp.float32)
    gathered = jnp.take(flat, jnp.clip(src_idx, 0, H * W - 1), axis=-1)
    gathered = jnp.where(src_idx[None, None, :] >= 0, gathered, 0.0)
    return gathered.reshape(N, C, H, W).astype(x.dtype)


class Rotate:
    """Pallas port of the PyTorch `Rotate` module.

    forward(input): pick one degree from `degrees` (deterministically seeded
    Python RNG, mirroring random.choice) and rotate the NCHW batch.
    """
    # TODO(synk): torchvision F.rotate kwargs (interpolation/expand/fill/center)
    # other than the defaults (NEAREST, expand=False, fill=0, center=None) are
    # not plumbed through.

    def __init__(self, degrees, seed=0, **kwargs):
        self.degrees = list(degrees)
        self.rotate_transform_kwargs = kwargs
        self._rng = random.Random(seed)

    def __call__(self, x):
        degree = self._rng.choice(self.degrees)
        return rotate_pallas(x, degree)

    forward = __call__


if __name__ == "__main__":
    key = jax.random.PRNGKey(0)
    x = jax.random.normal(key, (2, 4, 16, 16), dtype=jnp.float32)  # NCHW

    module = Rotate([0, 30, 45, 90, 180, -60], seed=0)
    degree_used = random.Random(0).choice(module.degrees)  # same pick the module makes

    out = jax.block_until_ready(module(x))
    ref = jax.block_until_ready(rotate_ref(x, degree_used))
    np.testing.assert_allclose(np.asarray(out), np.asarray(ref), atol=1e-6, rtol=1e-6)
    assert out.shape == x.shape and out.dtype == x.dtype

    # Extra coverage: other angles at the small shape.
    for deg in (90, -60, 45):
        o = jax.block_until_ready(rotate_pallas(x, deg))
        r = jax.block_until_ready(rotate_ref(x, deg))
        np.testing.assert_allclose(np.asarray(o), np.asarray(r), atol=1e-6, rtol=1e-6)

    # Shape that pads rows, uses several output tiles and spans >1 K block
    # (exercises the multi-k accumulate + band_len clamping path).
    x2 = jax.random.normal(jax.random.PRNGKey(1), (2, 3, 64, 64), dtype=jnp.float32)
    o2 = jax.block_until_ready(rotate_pallas(x2, 45))
    r2 = jax.block_until_ready(rotate_ref(x2, 45))
    np.testing.assert_allclose(np.asarray(o2), np.asarray(r2), atol=1e-6, rtol=1e-6)

    # bf16 input -> dtype-matched bf16 MXU path (structurally exact gather).
    xb = x2.astype(jnp.bfloat16)
    ob = jax.block_until_ready(rotate_pallas(xb, 45))
    rb = jax.block_until_ready(rotate_ref(xb, 45))
    np.testing.assert_array_equal(np.asarray(ob).astype(np.float32),
                                  np.asarray(rb).astype(np.float32))

    print("KERNEL_OK")
</pallas_src>

<mosaic_0001>
module attributes {stable_mosaic.version = 11 : i64} {
  func.func @_rotate_gather_kernel(%arg0: i32, %arg1: i32, %arg2: i32, %arg3: memref<1xi32, #tpu.memory_space<smem>>, %arg4: memref<1xi32, #tpu.memory_space<smem>>, %arg5: memref<1x1x256xi32, #tpu.memory_space<vmem>>, %arg6: memref<8x256xf32, #tpu.memory_space<vmem>>, %arg7: memref<8x256xf32, #tpu.memory_space<vmem>>) attributes {dimension_semantics = [#tpu.dimension_semantics<parallel>, #tpu.dimension_semantics<parallel>, #tpu.dimension_semantics<arbitrary>], iteration_bounds = array<i64: 1, 1, 1>, scalar_prefetch = 2 : i64, scratch_operands = 0 : i64, tpu.core_type = #tpu.core_type<tc>, window_params = [{transform_indices = @transform_0, window_bounds = array<i64: 1, 1, 256>}, {transform_indices = @transform_1, window_bounds = array<i64: 8, 256>}, {transform_indices = @transform_2, window_bounds = array<i64: 8, 256>}]} {
    %0 = arith.index_cast %arg1 : i32 to index
    %1 = memref.load %arg3[%0] : memref<1xi32, #tpu.memory_space<smem>>
    %2 = arith.addi %1, %arg2 : i32
    %c256_i32 = arith.constant 256 : i32
    %3 = arith.muli %2, %c256_i32 : i32
    %4 = tpu.iota {dimensions = array<i32: 0>} : vector<256x256xi32>
    %5 = vector.broadcast %3 : i32 to vector<256x256xi32>
    %6 = arith.addi %4, %5 : vector<256x256xi32>
    %c0 = arith.constant 0 : index
    %c0_0 = arith.constant 0 : index
    %c0_1 = arith.constant 0 : index
    %7 = vector.load %arg5[%c0, %c0_0, %c0_1] : memref<1x1x256xi32, #tpu.memory_space<vmem>>, vector<1x1x256xi32>
    %8 = vector.shape_cast %7 : vector<1x1x256xi32> to vector<1x256xi32>
    %9 = vector.broadcast %8 : vector<1x256xi32> to vector<256x256xi32>
    %10 = arith.cmpi eq, %6, %9 : vector<256x256xi32>
    %cst = arith.constant 1.000000e+00 : f32
    %cst_2 = arith.constant 0.000000e+00 : f32
    %11 = vector.broadcast %cst : f32 to vector<256x256xf32>
    %12 = vector.broadcast %cst_2 : f32 to vector<256x256xf32>
    %13 = arith.select %10, %11, %12 : vector<256x256xi1>, vector<256x256xf32>
    %c0_3 = arith.constant 0 : index
    %c0_4 = arith.constant 0 : index
    %14 = vector.load %arg6[%c0_3, %c0_4] : memref<8x256xf32, #tpu.memory_space<vmem>>, vector<8x256xf32>
    %cst_5 = arith.constant dense<0.000000e+00> : vector<8x256xf32>
    %15 = tpu.matmul %14, %13, %cst_5 {dimension_numbers = #tpu.dot_dimension_numbers<[1], [0], [0], [1], [0, 0, 1, 1], [], []>, precision = #tpu.contract_precision<fp32>} : vector<8x256xf32>, vector<256x256xf32>, vector<8x256xf32> -> vector<8x256xf32>
    %c0_6 = arith.constant 0 : index
    %c0_7 = arith.constant 0 : index
    %16 = vector.load %arg7[%c0_6, %c0_7] : memref<8x256xf32, #tpu.memory_space<vmem>>, vector<8x256xf32>
    tpu.vector_store %arg7[%c0_6, %c0_7], %15 {strides = array<i32>} : memref<8x256xf32, #tpu.memory_space<vmem>>, vector<8x256xf32>,
    return
  }
  func.func @transform_0(%arg0: i32, %arg1: i32, %arg2: i32, %arg3: memref<1xi32, #tpu.memory_space<smem>>, %arg4: memref<1xi32, #tpu.memory_space<smem>>) -> (i32, i32, i32) {
    %c0_i32 = arith.constant 0 : i32
    %c0_i32_0 = arith.constant 0 : i32
    %c0_i32_1 = arith.constant 0 : i32
    return %arg1, %c0_i32, %c0_i32_0 : i32, i32, i32
  }
  func.func @transform_1(%arg0: i32, %arg1: i32, %arg2: i32, %arg3: memref<1xi32, #tpu.memory_space<smem>>, %arg4: memref<1xi32, #tpu.memory_space<smem>>) -> (i32, i32) {
    %0 = arith.index_cast %arg1 : i32 to index
    %1 = memref.load %arg3[%0] : memref<1xi32, #tpu.memory_space<smem>>
    %2 = arith.index_cast %arg1 : i32 to index
    %3 = memref.load %arg4[%2] : memref<1xi32, #tpu.memory_space<smem>>
    %c1_i32 = arith.constant 1 : i32
    %4 = arith.subi %3, %c1_i32 : i32
    %5 = arith.minsi %arg2, %4 : i32
    %6 = arith.addi %1, %5 : i32
    %c0_i32 = arith.constant 0 : i32
    return %arg0, %6 : i32, i32
  }
  func.func @transform_2(%arg0: i32, %arg1: i32, %arg2: i32, %arg3: memref<1xi32, #tpu.memory_space<smem>>, %arg4: memref<1xi32, #tpu.memory_space<smem>>) -> (i32, i32) {
    %c0_i32 = arith.constant 0 : i32
    return %arg0, %arg1 : i32, i32
  }
}

</mosaic_0001>

<llo_original>
// kernel: _rotate_padded_call.1
$region0: #{_rotate_padded_call.1}
  #allocation0 [shape = 'u32[]', space=smem, size = 0x4, offset = 0x4, fixed_abs, tag = 'smem constant byte address 0x4 - core index']
  #allocation1 [shape = 'u32[144,128]{1,0:T(1,128)}', space=vmem, size = 0x12000, scoped, tag = 'internal scratch']
  #allocation2 [shape = 's32[1]{0}', space=sflag, size = 0x4, scoped, tag = 'scoped memory for _rotate_padded_call.1']
  #allocation3 [shape = 's32[1]{0:T(128)S(6)}', space=smem, size = 0x200, scoped, tag = 'prefetched SMEM operand 0']
  #allocation4 [shape = 's32[1]{0:T(128)S(6)}', space=smem, size = 0x200, scoped, tag = 'prefetched SMEM operand 1']
  %s0 = inlined_call_operand.<no memory space> [shape: s32[1], index: 0, kind: input, shape index: {}]
  %s1 = inlined_call_operand.<no memory space> [shape: s32[1], index: 1, kind: input, shape index: {}]
  %s2 = inlined_call_operand.vmem [shape: s32[1,1,256], index: 2, kind: input, shape index: {}]
  %s3 = inlined_call_operand.vmem [shape: f32[8,256], index: 3, kind: input, shape index: {}]
  %s4 = inlined_call_operand.vmem [shape: f32[8,256], index: 4, kind: output, shape index: {}]
  %s5 = sld [smem:[#allocation0]]
  $region18: #{_rotate_padded_call.1} parent=0
    _
  %s7 = ssub.s32 1, %s5
  %s8 = scalar_select 0, %s7, %s5
  %9 = sst [smem:[#allocation3]] %s0
  %10 = sst [smem:[#allocation4]] %s1
  // Predicated region
  $region2: #{_rotate_padded_call.1} parent=0 // pred_check
    _
  $region3: #{_rotate_padded_call.1} parent=0 // pred_check_branch
    %12 = sbr.rel (0) target = $region5
  $region4: #{_rotate_padded_call.1} parent=0 // pred_region
    _
  $region5: #{_rotate_padded_call.1} parent=0 // pred_fallthru
    _
  // Predicated region
  $region6: #{_rotate_padded_call.1} parent=0 // pred_check
    _
  $region7: #{_rotate_padded_call.1} parent=0 // pred_check_branch
    %14 = sbr.rel (0) target = $region9
  $region8: #{_rotate_padded_call.1} parent=0 // pred_region
    %s15 = sld [smem:[#allocation3]]
    %s16 = sld [smem:[#allocation4]]
    %s17 = ssub.s32 %s16, 1
    %p18 = scmp.lt.s32.totalorder 0, %s17
    %s19 = scalar_select %p18, 0, %s17
    %s20 = sadd.s32 %s15, %s19
    %s21 = smul.u32 2, %s20
    %p22 = scmp.lt.s32.totalorder %s21, 1
    %s23 = scalar_select %p22, %s21, 1
    %s24 = smul.addr %s23, 8
    %s25 = scalar_lea.vmem %s3, %s24
    %s26 = sld [smem:[#allocation3]]
    %s27 = sld [smem:[#allocation4]]
    %s28 = ssub.s32 %s27, 1
    %p29 = scmp.lt.s32.totalorder 0, %s28
    %s30 = scalar_select %p29, 0, %s28
    %s31 = sadd.s32 %s26, %s30
    %s32 = smul.u32 2, %s31
  $region9: #{_rotate_padded_call.1} parent=0 // pred_fallthru
    _
  %s33 = sld [smem:[#allocation3]]
  %s34 = sld [smem:[#allocation4]]
  %s35 = ssub.s32 %s34, 1
  %p36 = scmp.lt.s32.totalorder 0, %s35
  %s37 = scalar_select %p36, 0, %s35
  %s38 = sadd.s32 %s33, %s37
  %s39 = smul.u32 2, %s38
  %p40 = scmp.lt.s32.totalorder %s39, 1
  %s41 = scalar_select %p40, %s39, 1
  %s42 = smul.addr %s41, 8
  %s43 = scalar_lea.vmem %s3, %s42
  %s44 = sld [smem:[#allocation3]]
  %s45 = sld [smem:[#allocation4]]
  %s46 = ssub.s32 %s45, 1
  %p47 = scmp.lt.s32.totalorder 0, %s46
  %s48 = scalar_select %p47, 0, %s46
  %s49 = sadd.s32 %s44, %s48
  %s50 = smul.u32 2, %s49
  %p51 = scmp.lt.s32.totalorder %s50, 1
  %s52 = scalar_select %p51, %s50, 1
  %s53 = smul.addr %s52, 8
  %s54 = scalar_lea.vmem %s3, %s53
  %s55 = sld [smem:[#allocation3]]
  %s56 = sld [smem:[#allocation4]]
  %s57 = ssub.s32 %s56, 1
  %p58 = scmp.lt.s32.totalorder 0, %s57
  %s59 = scalar_select %p58, 0, %s57
  %s60 = sadd.s32 %s55, %s59
  %s61 = smul.u32 2, %s60
  %s62 = sld [smem:[#allocation3]]
  %s63 = sadd.s32 %s62, 0
  %s64 = smul.u32 %s63, 256
  %v65 = vlaneseq
  %v66 = vshrl.u32 %v65, 7
  %v67 = vadd.s32 %v66, 8
  %v68 = vadd.s32 %v66, 16
  %v69 = vadd.s32 %v66, 24
  %v70 = vadd.s32 %v66, 32
  %v71 = vadd.s32 %v66, 40
  %v72 = vadd.s32 %v66, 48
  %v73 = vadd.s32 %v66, 56
  %v74 = vadd.s32 %v66, 64
  %v75 = vadd.s32 %v66, 72
  %v76 = vadd.s32 %v66, 80
  %v77 = vadd.s32 %v66, 88
  %v78 = vadd.s32 %v66, 96
  %v79 = vadd.s32 %v66, 104
  %v80 = vadd.s32 %v66, 112
  %v81 = vadd.s32 %v66, 120
  %v82 = vadd.s32 %v66, 128
  %v83 = vadd.s32 %v66, 136
  %v84 = vadd.s32 %v66, 144
  %v85 = vadd.s32 %v66, 152
  %v86 = vadd.s32 %v66, 160
  %v87 = vadd.s32 %v66, 168
  %v88 = vadd.s32 %v66, 176
  %v89 = vadd.s32 %v66, 184
  %v90 = vadd.s32 %v66, 192
  %v91 = vadd.s32 %v66, 200
  %v92 = vadd.s32 %v66, 208
  %v93 = vadd.s32 %v66, 216
  %v94 = vadd.s32 %v66, 224
  %v95 = vadd.s32 %v66, 232
  %v96 = vadd.s32 %v66, 240
  %v97 = vadd.s32 %v66, 248
  %v98 = vstv %s64
  %v99 = vadd.s32 %v66, %v98
  %v100 = vadd.s32 %v67, %v98
  %v101 = vadd.s32 %v68, %v98
  %v102 = vadd.s32 %v69, %v98
  %v103 = vadd.s32 %v70, %v98
  %v104 = vadd.s32 %v71, %v98
  %v105 = vadd.s32 %v72, %v98
  %v106 = vadd.s32 %v73, %v98
  %v107 = vadd.s32 %v74, %v98
  %v108 = vadd.s32 %v75, %v98
  %v109 = vadd.s32 %v76, %v98
  %v110 = vadd.s32 %v77, %v98
  %v111 = vadd.s32 %v78, %v98
  %v112 = vadd.s32 %v79, %v98
  %v113 = vadd.s32 %v80, %v98
  %v114 = vadd.s32 %v81, %v98
  %v115 = vadd.s32 %v82, %v98
  %v116 = vadd.s32 %v83, %v98
  %v117 = vadd.s32 %v84, %v98
  %v118 = vadd.s32 %v85, %v98
  %v119 = vadd.s32 %v86, %v98
  %v120 = vadd.s32 %v87, %v98
  %v121 = vadd.s32 %v88, %v98
  %v122 = vadd.s32 %v89, %v98
  %v123 = vadd.s32 %v90, %v98
  %v124 = vadd.s32 %v91, %v98
  %v125 = vadd.s32 %v92, %v98
  %v126 = vadd.s32 %v93, %v98
  %v127 = vadd.s32 %v94, %v98
  %v128 = vadd.s32 %v95, %v98
  %v129 = vadd.s32 %v96, %v98
  %v130 = vadd.s32 %v97, %v98
  %v131 = vld [vmem:[%s2] sm:$0x3]
  %v132 = vlaneseq
  %v133 = vshrl.u32 %v132, 7
  %v134 = vsub.s32 0, %v133
  %v135 = vrot.slane %v131, %v134
  %v136 = vlaneseq
  %v137 = vshrl.u32 %v136, 7
  %v138 = vsub.s32 1, %v137
  %v139 = vrot.slane %v131, %v138
  %vm140 = vcmp.eq.s32.totalorder %v99, %v135
  %vm141 = vcmp.eq.s32.totalorder %v99, %v139
  %vm142 = vcmp.eq.s32.totalorder %v100, %v135
  %vm143 = vcmp.eq.s32.totalorder %v100, %v139
  %vm144 = vcmp.eq.s32.totalorder %v101, %v135
  %vm145 = vcmp.eq.s32.totalorder %v101, %v139
  %vm146 = vcmp.eq.s32.totalorder %v102, %v135
  %vm147 = vcmp.eq.s32.totalorder %v102, %v139
  %vm148 = vcmp.eq.s32.totalorder %v103, %v135
  %vm149 = vcmp.eq.s32.totalorder %v103, %v139
  %vm150 = vcmp.eq.s32.totalorder %v104, %v135
  %vm151 = vcmp.eq.s32.totalorder %v104, %v139
  %vm152 = vcmp.eq.s32.totalorder %v105, %v135
  %vm153 = vcmp.eq.s32.totalorder %v105, %v139
  %vm154 = vcmp.eq.s32.totalorder %v106, %v135
  %vm155 = vcmp.eq.s32.totalorder %v106, %v139
  %vm156 = vcmp.eq.s32.totalorder %v107, %v135
  %vm157 = vcmp.eq.s32.totalorder %v107, %v139
  %vm158 = vcmp.eq.s32.totalorder %v108, %v135
  %vm159 = vcmp.eq.s32.totalorder %v108, %v139
  %vm160 = vcmp.eq.s32.totalorder %v109, %v135
  %vm161 = vcmp.eq.s32.totalorder %v109, %v139
  %vm162 = vcmp.eq.s32.totalorder %v110, %v135
  %vm163 = vcmp.eq.s32.totalorder %v110, %v139
  %vm164 = vcmp.eq.s32.totalorder %v111, %v135
  %vm165 = vcmp.eq.s32.totalorder %v111, %v139
  %vm166 = vcmp.eq.s32.totalorder %v112, %v135
  %vm167 = vcmp.eq.s32.totalorder %v112, %v139
  %vm168 = vcmp.eq.s32.totalorder %v113, %v135
  %vm169 = vcmp.eq.s32.totalorder %v113, %v139
  %vm170 = vcmp.eq.s32.totalorder %v114, %v135
  %vm171 = vcmp.eq.s32.totalorder %v114, %v139
  %vm172 = vcmp.eq.s32.totalorder %v115, %v135
  %vm173 = vcmp.eq.s32.totalorder %v115, %v139
  %vm174 = vcmp.eq.s32.totalorder %v116, %v135
  %vm175 = vcmp.eq.s32.totalorder %v116, %v139
  %vm176 = vcmp.eq.s32.totalorder %v117, %v135
  %vm177 = vcmp.eq.s32.totalorder %v117, %v139
  %vm178 = vcmp.eq.s32.totalorder %v118, %v135
  %vm179 = vcmp.eq.s32.totalorder %v118, %v139
  %vm180 = vcmp.eq.s32.totalorder %v119, %v135
  %vm181 = vcmp.eq.s32.totalorder %v119, %v139
  %vm182 = vcmp.eq.s32.totalorder %v120, %v135
  %vm183 = vcmp.eq.s32.totalorder %v120, %v139
  %vm184 = vcmp.eq.s32.totalorder %v121, %v135
  %vm185 = vcmp.eq.s32.totalorder %v121, %v139
  %vm186 = vcmp.eq.s32.totalorder %v122, %v135
  %vm187 = vcmp.eq.s32.totalorder %v122, %v139
  %vm188 = vcmp.eq.s32.totalorder %v123, %v135
  %vm189 = vcmp.eq.s32.totalorder %v123, %v139
  %vm190 = vcmp.eq.s32.totalorder %v124, %v135
  %vm191 = vcmp.eq.s32.totalorder %v124, %v139
  %vm192 = vcmp.eq.s32.totalorder %v125, %v135
  %vm193 = vcmp.eq.s32.totalorder %v125, %v139
  %vm194 = vcmp.eq.s32.totalorder %v126, %v135
  %vm195 = vcmp.eq.s32.totalorder %v126, %v139
  %vm196 = vcmp.eq.s32.totalorder %v127, %v135
  %vm197 = vcmp.eq.s32.totalorder %v127, %v139
  %vm198 = vcmp.eq.s32.totalorder %v128, %v135
  %vm199 = vcmp.eq.s32.totalorder %v128, %v139
  %vm200 = vcmp.eq.s32.totalorder %v129, %v135
  %vm201 = vcmp.eq.s32.totalorder %v129, %v139
  %vm202 = vcmp.eq.s32.totalorder %v130, %v135
  %vm203 = vcmp.eq.s32.totalorder %v130, %v139
  %v204 = vsel %vm140, 1.0, 0.0
  %v205 = vsel %vm141, 1.0, 0.0
  %v206 = vsel %vm142, 1.0, 0.0
  %v207 = vsel %vm143, 1.0, 0.0
  %v208 = vsel %vm144, 1.0, 0.0
  %v209 = vsel %vm145, 1.0, 0.0
  %v210 = vsel %vm146, 1.0, 0.0
  %v211 = vsel %vm147, 1.0, 0.0
  %v212 = vsel %vm148, 1.0, 0.0
  %v213 = vsel %vm149, 1.0, 0.0
  %v214 = vsel %vm150, 1.0, 0.0
  %v215 = vsel %vm151, 1.0, 0.0
  %v216 = vsel %vm152, 1.0, 0.0
  %v217 = vsel %vm153, 1.0, 0.0
  %v218 = vsel %vm154, 1.0, 0.0
  %v219 = vsel %vm155, 1.0, 0.0
  %v220 = vsel %vm156, 1.0, 0.0
  %v221 = vsel %vm157, 1.0, 0.0
  %v222 = vsel %vm158, 1.0, 0.0
  %v223 = vsel %vm159, 1.0, 0.0
  %v224 = vsel %vm160, 1.0, 0.0
  %v225 = vsel %vm161, 1.0, 0.0
  %v226 = vsel %vm162, 1.0, 0.0
  %v227 = vsel %vm163, 1.0, 0.0
  %v228 = vsel %vm164, 1.0, 0.0
  %v229 = vsel %vm165, 1.0, 0.0
  %v230 = vsel %vm166, 1.0, 0.0
  %v231 = vsel %vm167, 1.0, 0.0
  %v232 = vsel %vm168, 1.0, 0.0
  %v233 = vsel %vm169, 1.0, 0.0
  %v234 = vsel %vm170, 1.0, 0.0
  %v235 = vsel %vm171, 1.0, 0.0
  %v236 = vsel %vm172, 1.0, 0.0
  %v237 = vsel %vm173, 1.0, 0.0
  %v238 = vsel %vm174, 1.0, 0.0
  %v239 = vsel %vm175, 1.0, 0.0
  %v240 = vsel %vm176, 1.0, 0.0
  %v241 = vsel %vm177, 1.0, 0.0
  %v242 = vsel %vm178, 1.0, 0.0
  %v243 = vsel %vm179, 1.0, 0.0
  %v244 = vsel %vm180, 1.0, 0.0
  %v245 = vsel %vm181, 1.0, 0.0
  %v246 = vsel %vm182, 1.0, 0.0
  %v247 = vsel %vm183, 1.0, 0.0
  %v248 = vsel %vm184, 1.0, 0.0
  %v249 = vsel %vm185, 1.0, 0.0
  %v250 = vsel %vm186, 1.0, 0.0
  %v251 = vsel %vm187, 1.0, 0.0
  %v252 = vsel %vm188, 1.0, 0.0
  %v253 = vsel %vm189, 1.0, 0.0
  %v254 = vsel %vm190, 1.0, 0.0
  %v255 = vsel %vm191, 1.0, 0.0
  %v256 = vsel %vm192, 1.0, 0.0
  %v257 = vsel %vm193, 1.0, 0.0
  %v258 = vsel %vm194, 1.0, 0.0
  %v259 = vsel %vm195, 1.0, 0.0
  %v260 = vsel %vm196, 1.0, 0.0
  %v261 = vsel %vm197, 1.0, 0.0
  %v262 = vsel %vm198, 1.0, 0.0
  %v263 = vsel %vm199, 1.0, 0.0
  %v264 = vsel %vm200, 1.0, 0.0
  %v265 = vsel %vm201, 1.0, 0.0
  %v266 = vsel %vm202, 1.0, 0.0
  %v267 = vsel %vm203, 1.0, 0.0
  %v268 = vld [vmem:[%s54] sm:$0xff]
  %v269 = vld [vmem:[%s54 + $0x8] sm:$0xff]
  %270 = vmatprep.subr.mxu0 %v205
  %271 = vmatpush1.msra.mxu0 %v204
  %272 = vmatprep.subr.mxu0 %v207
  %273 = vmatpush1.msra.mxu0 %v206
  %274 = vmatprep.subr.mxu0 %v209
  %275 = vmatpush1.msra.mxu0 %v208
  %276 = vmatprep.subr.mxu0 %v211
  %277 = vmatpush1.msra.mxu0 %v210
  %278 = vmatprep.subr.mxu0 %v213
  %279 = vmatpush1.msra.mxu0 %v212
  %280 = vmatprep.subr.mxu0 %v215
  %281 = vmatpush1.msra.mxu0 %v214
  %282 = vmatprep.subr.mxu0 %v217
  %283 = vmatpush1.msra.mxu0 %v216
  %284 = vmatprep.subr.mxu0 %v219
  %285 = vmatpush1.msra.mxu0 %v218
  %286 = vmatprep.subr.mxu0 %v221
  %287 = vmatpush1.msra.mxu0 %v220
  %288 = vmatprep.subr.mxu0 %v223
  %289 = vmatpush1.msra.mxu0 %v222
  %290 = vmatprep.subr.mxu0 %v225
  %291 = vmatpush1.msra.mxu0 %v224
  %292 = vmatprep.subr.mxu0 %v227
  %293 = vmatpush1.msra.mxu0 %v226
  %294 = vmatprep.subr.mxu0 %v229
  %295 = vmatpush1.msra.mxu0 %v228
  %296 = vmatprep.subr.mxu0 %v231
  %297 = vmatpush1.msra.mxu0 %v230
  %298 = vmatprep.subr.mxu0 %v233
  %299 = vmatpush1.msra.mxu0 %v232
  %300 = vmatprep.subr.mxu0 %v235
  %301 = vmatpush1.msra.mxu0 %v234
  %302 = vmatprep.subr.mxu0 %v237
  %303 = vmatpush1.msra.mxu0 %v236
  %304 = vmatprep.subr.mxu0 %v239
  %305 = vmatpush1.msra.mxu0 %v238
  %306 = vmatprep.subr.mxu0 %v241
  %307 = vmatpush1.msra.mxu0 %v240
  %308 = vmatprep.subr.mxu0 %v243
  %309 = vmatpush1.msra.mxu0 %v242
  %310 = vmatprep.subr.mxu0 %v245
  %311 = vmatpush1.msra.mxu0 %v244
  %312 = vmatprep.subr.mxu0 %v247
  %313 = vmatpush1.msra.mxu0 %v246
  %314 = vmatprep.subr.mxu0 %v249
  %315 = vmatpush1.msra.mxu0 %v248
  %316 = vmatprep.subr.mxu0 %v251
  %317 = vmatpush1.msra.mxu0 %v250
  %318 = vmatprep.subr.mxu0 %v253
  %319 = vmatpush1.msra.mxu0 %v252
  %320 = vmatprep.subr.mxu0 %v255
  %321 = vmatpush1.msra.mxu0 %v254
  %322 = vmatprep.subr.mxu0 %v257
  %323 = vmatpush1.msra.mxu0 %v256
  %324 = vmatprep.subr.mxu0 %v259
  %325 = vmatpush1.msra.mxu0 %v258
  %326 = vmatprep.subr.mxu0 %v261
  %327 = vmatpush1.msra.mxu0 %v260
  %328 = vmatprep.subr.mxu0 %v263
  %329 = vmatpush1.msra.mxu0 %v262
  %330 = vmatprep.subr.mxu0 %v265
  %331 = vmatpush1.msra.mxu0 %v264
  %332 = vmatprep.subr.mxu0 %v267
  %333 = vmatpush1.msra.mxu0 %v266
  %v334 = vand.u32 %v269, 4294901760
  %v335 = vsub.f32 %v269, %v334
  %v336 = vand.u32 %v335, 4294901760
  %v337 = vsub.f32 %v335, %v336
  %v338 = vand.u32 %v337, 4294901760
  %339 = vmatprep.mubr.f32.mxu0 %v338
  %v340 = vand.u32 %v268, 4294901760
  %v341 = vsub.f32 %v268, %v340
  %v342 = vand.u32 %v341, 4294901760
  %v343 = vsub.f32 %v341, %v342
  %v344 = vand.u32 %v343, 4294901760
  %345 = vmatmul.mubr.f32.gmra.mrb[0].mxu0 %v344
  %v346 = vpop.f32.mrb[0].mxu0
  %v347 = vadd.f32 0.0, %v346
  %v348 = vpop.f32.mrb[0].mxu0
  %v349 = vadd.f32 0.0, %v348
  %350 = vdwg.mxu0
  %v351 = vsub.f32 %v205, %v205
  %v352 = vand.u32 %v351, 4294901760
  %v353 = vsub.f32 %v351, %v352
  %v354 = vand.u32 %v353, 4294901760
  %355 = vmatprep.subr.mxu0 %v354
  %v356 = vsub.f32 %v204, %v204
  %v357 = vand.u32 %v356, 4294901760
  %v358 = vsub.f32 %v356, %v357
  %v359 = vand.u32 %v358, 4294901760
  %360 = vmatpush1.msra.mxu0 %v359
  %v361 = vsub.f32 %v207, %v207
  %v362 = vand.u32 %v361, 4294901760
  %v363 = vsub.f32 %v361, %v362
  %v364 = vand.u32 %v363, 4294901760
  %365 = vmatprep.subr.mxu0 %v364
  %v366 = vsub.f32 %v206, %v206
  %v367 = vand.u32 %v366, 4294901760
  %v368 = vsub.f32 %v366, %v367
  %v369 = vand.u32 %v368, 4294901760
  %370 = vmatpush1.msra.mxu0 %v369
  %v371 = vsub.f32 %v209, %v209
  %v372 = vand.u32 %v371, 4294901760
  %v373 = vsub.f32 %v371, %v372
  %v374 = vand.u32 %v373, 4294901760
  %375 = vmatprep.subr.mxu0 %v374
  %v376 = vsub.f32 %v208, %v208
  %v377 = vand.u32 %v376, 4294901760
  %v378 = vsub.f32 %v376, %v377
  %v379 = vand.u32 %v378, 4294901760
  %380 = vmatpush1.msra.mxu0 %v379
  %v381 = vsub.f32 %v211, %v211
  %v382 = vand.u32 %v381, 4294901760
  %v383 = vsub.f32 %v381, %v382
  %v384 = vand.u32 %v383, 4294901760
  %385 = vmatprep.subr.mxu0 %v384
  %v386 = vsub.f32 %v210, %v210
  %v387 = vand.u32 %v386, 4294901760
  %v388 = vsub.f32 %v386, %v387
  %v389 = vand.u32 %v388, 4294901760
  %390 = vmatpush1.msra.mxu0 %v389
  %v391 = vsub.f32 %v213, %v213
  %v392 = vand.u32 %v391, 4294901760
  %v393 = vsub.f32 %v391, %v392
  %v394 = vand.u32 %v393, 4294901760
  %395 = vmatprep.subr.mxu0 %v394
  %v396 = vsub.f32 %v212, %v212
  %v397 = vand.u32 %v396, 4294901760
  %v398 = vsub.f32 %v396, %v397
  %v399 = vand.u32 %v398, 4294901760
  %400 = vmatpush1.msra.mxu0 %v399
  %v401 = vsub.f32 %v215, %v215
  %v402 = vand.u32 %v401, 4294901760
  %v403 = vsub.f32 %v401, %v402
  %v404 = vand.u32 %v403, 4294901760
  %405 = vmatprep.subr.mxu0 %v404
  %v406 = vsub.f32 %v214, %v214
  %v407 = vand.u32 %v406, 4294901760
  %v408 = vsub.f32 %v406, %v407
  %v409 = vand.u32 %v408, 4294901760
  %410 = vmatpush1.msra.mxu0 %v409
  %v411 = vsub.f32 %v217, %v217
  %v412 = vand.u32 %v411, 4294901760
  %v413 = vsub.f32 %v411, %v412
  %v414 = vand.u32 %v413, 4294901760
  %415 = vmatprep.subr.mxu0 %v414
  %v416 = vsub.f32 %v216, %v216
  %v417 = vand.u32 %v416, 4294901760
  %v418 = vsub.f32 %v416, %v417
  %v419 = vand.u32 %v418, 4294901760
  %420 = vmatpush1.msra.mxu0 %v419
  %v421 = vsub.f32 %v219, %v219
  %v422 = vand.u32 %v421, 4294901760
  %v423 = vsub.f32 %v421, %v422
  %v424 = vand.u32 %v423, 4294901760
  %425 = vmatprep.subr.mxu0 %v424
  %v426 = vsub.f32 %v218, %v218
  %v427 = vand.u32 %v426, 4294901760
  %v428 = vsub.f32 %v426, %v427
  %v429 = vand.u32 %v428, 4294901760
  %430 = vmatpush1.msra.mxu0 %v429
  %v431 = vsub.f32 %v221, %v221
  %v432 = vand.u32 %v431, 4294901760
  %v433 = vsub.f32 %v431, %v432
  %v434 = vand.u32 %v433, 4294901760
  %435 = vmatprep.subr.mxu0 %v434
  %v436 = vsub.f32 %v220, %v220
  %v437 = vand.u32 %v436, 4294901760
  %v438 = vsub.f32 %v436, %v437
  %v439 = vand.u32 %v438, 4294901760
  %440 = vmatpush1.msra.mxu0 %v439
  %v441 = vsub.f32 %v223, %v223
  %v442 = vand.u32 %v441, 4294901760
  %v443 = vsub.f32 %v441, %v442
  %v444 = vand.u32 %v443, 4294901760
  %445 = vmatprep.subr.mxu0 %v444
  %v446 = vsub.f32 %v222, %v222
  %v447 = vand.u32 %v446, 4294901760
  %v448 = vsub.f32 %v446, %v447
  %v449 = vand.u32 %v448, 4294901760
  %450 = vmatpush1.msra.mxu0 %v449
  %v451 = vsub.f32 %v225, %v225
  %v452 = vand.u32 %v451, 4294901760
  %v453 = vsub.f32 %v451, %v452
  %v454 = vand.u32 %v453, 4294901760
  %455 = vmatprep.subr.mxu0 %v454
  %v456 = vsub.f32 %v224, %v224
  %v457 = vand.u32 %v456, 4294901760
  %v458 = vsub.f32 %v456, %v457
  %v459 = vand.u32 %v458, 4294901760
  %460 = vmatpush1.msra.mxu0 %v459
  %v461 = vsub.f32 %v227, %v227
  %v462 = vand.u32 %v461, 4294901760
  %v463 = vsub.f32 %v461, %v462
  %v464 = vand.u32 %v463, 4294901760
  %465 = vmatprep.subr.mxu0 %v464
  %v466 = vsub.f32 %v226, %v226
  %v467 = vand.u32 %v466, 4294901760
  %v468 = vsub.f32 %v466, %v467
  %v469 = vand.u32 %v468, 4294901760
  %470 = vmatpush1.msra.mxu0 %v469
  %v471 = vsub.f32 %v229, %v229
  %v472 = vand.u32 %v471, 4294901760
  %v473 = vsub.f32 %v471, %v472
  %v474 = vand.u32 %v473, 4294901760
  %475 = vmatprep.subr.mxu0 %v474
  %v476 = vsub.f32 %v228, %v228
  %v477 = vand.u32 %v476, 4294901760
  %v478 = vsub.f32 %v476, %v477
  %v479 = vand.u32 %v478, 4294901760
  %480 = vmatpush1.msra.mxu0 %v479
  %v481 = vsub.f32 %v231, %v231
  %v482 = vand.u32 %v481, 4294901760
  %v483 = vsub.f32 %v481, %v482
  %v484 = vand.u32 %v483, 4294901760
  %485 = vmatprep.subr.mxu0 %v484
  %v486 = vsub.f32 %v230, %v230
  %v487 = vand.u32 %v486, 4294901760
  %v488 = vsub.f32 %v486, %v487
  %v489 = vand.u32 %v488, 4294901760
  %490 = vmatpush1.msra.mxu0 %v489
  %v491 = vsub.f32 %v233, %v233
  %v492 = vand.u32 %v491, 4294901760
  %v493 = vsub.f32 %v491, %v492
  %v494 = vand.u32 %v493, 4294901760
  %495 = vmatprep.subr.mxu0 %v494
  %v496 = vsub.f32 %v232, %v232
  %v497 = vand.u32 %v496, 4294901760
  %v498 = vsub.f32 %v496, %v497
  %v499 = vand.u32 %v498, 4294901760
  %500 = vmatpush1.msra.mxu0 %v499
  %v501 = vsub.f32 %v235, %v235
  %v502 = vand.u32 %v501, 4294901760
  %v503 = vsub.f32 %v501, %v502
  %v504 = vand.u32 %v503, 4294901760
  %505 = vmatprep.subr.mxu0 %v504
  %v506 = vsub.f32 %v234, %v234
  %v507 = vand.u32 %v506, 4294901760
  %v508 = vsub.f32 %v506, %v507
  %v509 = vand.u32 %v508, 4294901760
  %510 = vmatpush1.msra.mxu0 %v509
  %v511 = vsub.f32 %v237, %v237
  %v512 = vand.u32 %v511, 4294901760
  %v513 = vsub.f32 %v511, %v512
  %v514 = vand.u32 %v513, 4294901760
  %515 = vmatprep.subr.mxu0 %v514
  %v516 = vsub.f32 %v236, %v236
  %v517 = vand.u32 %v516, 4294901760
  %v518 = vsub.f32 %v516, %v517
  %v519 = vand.u32 %v518, 4294901760
  %520 = vmatpush1.msra.mxu0 %v519
  %v521 = vsub.f32 %v239, %v239
  %v522 = vand.u32 %v521, 4294901760
  %v523 = vsub.f32 %v521, %v522
  %v524 = vand.u32 %v523, 4294901760
  %525 = vmatprep.subr.mxu0 %v524
  %v526 = vsub.f32 %v238, %v238
  %v527 = vand.u32 %v526, 4294901760
  %v528 = vsub.f32 %v526, %v527
  %v529 = vand.u32 %v528, 4294901760
  %530 = vmatpush1.msra.mxu0 %v529
  %v531 = vsub.f32 %v241, %v241
  %v532 = vand.u32 %v531, 4294901760
  %v533 = vsub.f32 %v531, %v532
  %v534 = vand.u32 %v533, 4294901760
  %535 = vmatprep.subr.mxu0 %v534
  %v536 = vsub.f32 %v240, %v240
  %v537 = vand.u32 %v536, 4294901760
  %v538 = vsub.f32 %v536, %v537
  %v539 = vand.u32 %v538, 4294901760
  %540 = vmatpush1.msra.mxu0 %v539
  %v541 = vsub.f32 %v243, %v243
  %v542 = vand.u32 %v541, 4294901760
  %v543 = vsub.f32 %v541, %v542
  %v544 = vand.u32 %v543, 4294901760
  %545 = vmatprep.subr.mxu0 %v544
  %v546 = vsub.f32 %v242, %v242
  %v547 = vand.u32 %v546, 4294901760
  %v548 = vsub.f32 %v546, %v547
  %v549 = vand.u32 %v548, 4294901760
  %550 = vmatpush1.msra.mxu0 %v549
  %v551 = vsub.f32 %v245, %v245
  %v552 = vand.u32 %v551, 4294901760
  %v553 = vsub.f32 %v551, %v552
  %v554 = vand.u32 %v553, 4294901760
  %555 = vmatprep.subr.mxu0 %v554
  %v556 = vsub.f32 %v244, %v244
  %v557 = vand.u32 %v556, 4294901760
  %v558 = vsub.f32 %v556, %v557
  %v559 = vand.u32 %v558, 4294901760
  %560 = vmatpush1.msra.mxu0 %v559
  %v561 = vsub.f32 %v247, %v247
  %v562 = vand.u32 %v561, 4294901760
  %v563 = vsub.f32 %v561, %v562
  %v564 = vand.u32 %v563, 4294901760
  %565 = vmatprep.subr.mxu0 %v564
  %v566 = vsub.f32 %v246, %v246
  %v567 = vand.u32 %v566, 4294901760
  %v568 = vsub.f32 %v566, %v567
  %v569 = vand.u32 %v568, 4294901760
  %570 = vmatpush1.msra.mxu0 %v569
  %v571 = vsub.f32 %v249, %v249
  %v572 = vand.u32 %v571, 4294901760
  %v573 = vsub.f32 %v571, %v572
  %v574 = vand.u32 %v573, 4294901760
  %575 = vmatprep.subr.mxu0 %v574
  %v576 = vsub.f32 %v248, %v248
  %v577 = vand.u32 %v576, 4294901760
  %v578 = vsub.f32 %v576, %v577
  %v579 = vand.u32 %v578, 4294901760
  %580 = vmatpush1.msra.mxu0 %v579
  %v581 = vsub.f32 %v251, %v251
  %v582 = vand.u32 %v581, 4294901760
  %v583 = vsub.f32 %v581, %v582
  %v584 = vand.u32 %v583, 4294901760
  %585 = vmatprep.subr.mxu0 %v584
  %v586 = vsub.f32 %v250, %v250
  %v587 = vand.u32 %v586, 4294901760
  %v588 = vsub.f32 %v586, %v587
  %v589 = vand.u32 %v588, 4294901760
  %590 = vmatpush1.msra.mxu0 %v589
  %v591 = vsub.f32 %v253, %v253
  %v592 = vand.u32 %v591, 4294901760
  %v593 = vsub.f32 %v591, %v592
  %v594 = vand.u32 %v593, 4294901760
  %595 = vmatprep.subr.mxu0 %v594
  %v596 = vsub.f32 %v252, %v252
  %v597 = vand.u32 %v596, 4294901760
  %v598 = vsub.f32 %v596, %v597
  %v599 = vand.u32 %v598, 4294901760
  %600 = vmatpush1.msra.mxu0 %v599
  %v601 = vsub.f32 %v255, %v255
  %v602 = vand.u32 %v601, 4294901760
  %v603 = vsub.f32 %v601, %v602
  %v604 = vand.u32 %v603, 4294901760
  %605 = vmatprep.subr.mxu0 %v604
  %v606 = vsub.f32 %v254, %v254
  %v607 = vand.u32 %v606, 4294901760
  %v608 = vsub.f32 %v606, %v607
  %v609 = vand.u32 %v608, 4294901760
  %610 = vmatpush1.msra.mxu0 %v609
  %v611 = vsub.f32 %v257, %v257
  %v612 = vand.u32 %v611, 4294901760
  %v613 = vsub.f32 %v611, %v612
  %v614 = vand.u32 %v613, 4294901760
  %615 = vmatprep.subr.mxu0 %v614
  %v616 = vsub.f32 %v256, %v256
  %v617 = vand.u32 %v616, 4294901760
  %v618 = vsub.f32 %v616, %v617
  %v619 = vand.u32 %v618, 4294901760
  %620 = vmatpush1.msra.mxu0 %v619
  %v621 = vsub.f32 %v259, %v259
  %v622 = vand.u32 %v621, 4294901760
  %v623 = vsub.f32 %v621, %v622
  %v624 = vand.u32 %v623, 4294901760
  %625 = vmatprep.subr.mxu0 %v624
  %v626 = vsub.f32 %v258, %v258
  %v627 = vand.u32 %v626, 4294901760
  %v628 = vsub.f32 %v626, %v627
  %v629 = vand.u32 %v628, 4294901760
  %630 = vmatpush1.msra.mxu0 %v629
  %v631 = vsub.f32 %v261, %v261
  %v632 = vand.u32 %v631, 4294901760
  %v633 = vsub.f32 %v631, %v632
  %v634 = vand.u32 %v633, 4294901760
  %635 = vmatprep.subr.mxu0 %v634
  %v636 = vsub.f32 %v260, %v260
  %v637 = vand.u32 %v636, 4294901760
  %v638 = vsub.f32 %v636, %v637
  %v639 = vand.u32 %v638, 4294901760
  %640 = vmatpush1.msra.mxu0 %v639
  %v641 = vsub.f32 %v263, %v263
  %v642 = vand.u32 %v641, 4294901760
  %v643 = vsub.f32 %v641, %v642
  %v644 = vand.u32 %v643, 4294901760
  %645 = vmatprep.subr.mxu0 %v644
  %v646 = vsub.f32 %v262, %v262
  %v647 = vand.u32 %v646, 4294901760
  %v648 = vsub.f32 %v646, %v647
  %v649 = vand.u32 %v648, 4294901760
  %650 = vmatpush1.msra.mxu0 %v649
  %v651 = vsub.f32 %v265, %v265
  %v652 = vand.u32 %v651, 4294901760
  %v653 = vsub.f32 %v651, %v652
  %v654 = vand.u32 %v653, 4294901760
  %655 = vmatprep.subr.mxu0 %v654
  %v656 = vsub.f32 %v264, %v264
  %v657 = vand.u32 %v656, 4294901760
  %v658 = vsub.f32 %v656, %v657
  %v659 = vand.u32 %v658, 4294901760
  %660 = vmatpush1.msra.mxu0 %v659
  %v661 = vsub.f32 %v267, %v267
  %v662 = vand.u32 %v661, 4294901760
  %v663 = vsub.f32 %v661, %v662
  %v664 = vand.u32 %v663, 4294901760
  %665 = vmatprep.subr.mxu0 %v664
  %v666 = vsub.f32 %v266, %v266
  %v667 = vand.u32 %v666, 4294901760
  %v668 = vsub.f32 %v666, %v667
  %v669 = vand.u32 %v668, 4294901760
  %670 = vmatpush1.msra.mxu0 %v669
  %v671 = vand.u32 %v269, 4294901760
  %672 = vmatprep.mubr.f32.mxu0 %v671
  %v673 = vand.u32 %v268, 4294901760
  %674 = vmatmul.mubr.f32.gmra.mrb[0].mxu0 %v673
  %v675 = vpop.f32.mrb[0].mxu0
  %v676 = vadd.f32 %v347, %v675
  %v677 = vpop.f32.mrb[0].mxu0
  %v678 = vadd.f32 %v349, %v677
  %679 = vdwg.mxu0
  %v680 = vsub.f32 %v205, %v205
  %681 = vmatprep.subr.mxu0 %v680
  %v682 = vsub.f32 %v204, %v204
  %683 = vmatpush1.msra.mxu0 %v682
  %v684 = vsub.f32 %v207, %v207
  %685 = vmatprep.subr.mxu0 %v684
  %v686 = vsub.f32 %v206, %v206
  %687 = vmatpush1.msra.mxu0 %v686
  %v688 = vsub.f32 %v209, %v209
  %689 = vmatprep.subr.mxu0 %v688
  %v690 = vsub.f32 %v208, %v208
  %691 = vmatpush1.msra.mxu0 %v690
  %v692 = vsub.f32 %v211, %v211
  %693 = vmatprep.subr.mxu0 %v692
  %v694 = vsub.f32 %v210, %v210
  %695 = vmatpush1.msra.mxu0 %v694
  %v696 = vsub.f32 %v213, %v213
  %697 = vmatprep.subr.mxu0 %v696
  %v698 = vsub.f32 %v212, %v212
  %699 = vmatpush1.msra.mxu0 %v698
  %v700 = vsub.f32 %v215, %v215
  %701 = vmatprep.subr.mxu0 %v700
  %v702 = vsub.f32 %v214, %v214
  %703 = vmatpush1.msra.mxu0 %v702
  %v704 = vsub.f32 %v217, %v217
  %705 = vmatprep.subr.mxu0 %v704
  %v706 = vsub.f32 %v216, %v216
  %707 = vmatpush1.msra.mxu0 %v706
  %v708 = vsub.f32 %v219, %v219
  %709 = vmatprep.subr.mxu0 %v708
  %v710 = vsub.f32 %v218, %v218
  %711 = vmatpush1.msra.mxu0 %v710
  %v712 = vsub.f32 %v221, %v221
  %713 = vmatprep.subr.mxu0 %v712
  %v714 = vsub.f32 %v220, %v220
  %715 = vmatpush1.msra.mxu0 %v714
  %v716 = vsub.f32 %v223, %v223
  %717 = vmatprep.subr.mxu0 %v716
  %v718 = vsub.f32 %v222, %v222
  %719 = vmatpush1.msra.mxu0 %v718
  %v720 = vsub.f32 %v225, %v225
  %721 = vmatprep.subr.mxu0 %v720
  %v722 = vsub.f32 %v224, %v224
  %723 = vmatpush1.msra.mxu0 %v722
  %v724 = vsub.f32 %v227, %v227
  %725 = vmatprep.subr.mxu0 %v724
  %v726 = vsub.f32 %v226, %v226
  %727 = vmatpush1.msra.mxu0 %v726
  %v728 = vsub.f32 %v229, %v229
  %729 = vmatprep.subr.mxu0 %v728
  %v730 = vsub.f32 %v228, %v228
  %731 = vmatpush1.msra.mxu0 %v730
  %v732 = vsub.f32 %v231, %v231
  %733 = vmatprep.subr.mxu0 %v732
  %v734 = vsub.f32 %v230, %v230
  %735 = vmatpush1.msra.mxu0 %v734
  %v736 = vsub.f32 %v233, %v233
  %737 = vmatprep.subr.mxu0 %v736
  %v738 = vsub.f32 %v232, %v232
  %739 = vmatpush1.msra.mxu0 %v738
  %v740 = vsub.f32 %v235, %v235
  %741 = vmatprep.subr.mxu0 %v740
  %v742 = vsub.f32 %v234, %v234
  %743 = vmatpush1.msra.mxu0 %v742
  %v744 = vsub.f32 %v237, %v237
  %745 = vmatprep.subr.mxu0 %v744
  %v746 = vsub.f32 %v236, %v236
  %747 = vmatpush1.msra.mxu0 %v746
  %v748 = vsub.f32 %v239, %v239
  %749 = vmatprep.subr.mxu0 %v748
  %v750 = vsub.f32 %v238, %v238
  %751 = vmatpush1.msra.mxu0 %v750
  %v752 = vsub.f32 %v241, %v241
  %753 = vmatprep.subr.mxu0 %v752
  %v754 = vsub.f32 %v240, %v240
  %755 = vmatpush1.msra.mxu0 %v754
  %v756 = vsub.f32 %v243, %v243
  %757 = vmatprep.subr.mxu0 %v756
  %v758 = vsub.f32 %v242, %v242
  %759 = vmatpush1.msra.mxu0 %v758
  %v760 = vsub.f32 %v245, %v245
  %761 = vmatprep.subr.mxu0 %v760
  %v762 = vsub.f32 %v244, %v244
  %763 = vmatpush1.msra.mxu0 %v762
  %v764 = vsub.f32 %v247, %v247
  %765 = vmatprep.subr.mxu0 %v764
  %v766 = vsub.f32 %v246, %v246
  %767 = vmatpush1.msra.mxu0 %v766
  %v768 = vsub.f32 %v249, %v249
  %769 = vmatprep.subr.mxu0 %v768
  %v770 = vsub.f32 %v248, %v248
  %771 = vmatpush1.msra.mxu0 %v770
  %v772 = vsub.f32 %v251, %v251
  %773 = vmatprep.subr.mxu0 %v772
  %v774 = vsub.f32 %v250, %v250
  %775 = vmatpush1.msra.mxu0 %v774
  %v776 = vsub.f32 %v253, %v253
  %777 = vmatprep.subr.mxu0 %v776
  %v778 = vsub.f32 %v252, %v252
  %779 = vmatpush1.msra.mxu0 %v778
  %v780 = vsub.f32 %v255, %v255
  %781 = vmatprep.subr.mxu0 %v780
  %v782 = vsub.f32 %v254, %v254
  %783 = vmatpush1.msra.mxu0 %v782
  %v784 = vsub.f32 %v257, %v257
  %785 = vmatprep.subr.mxu0 %v784
  %v786 = vsub.f32 %v256, %v256
  %787 = vmatpush1.msra.mxu0 %v786
  %v788 = vsub.f32 %v259, %v259
  %789 = vmatprep.subr.mxu0 %v788
  %v790 = vsub.f32 %v258, %v258
  %791 = vmatpush1.msra.mxu0 %v790
  %v792 = vsub.f32 %v261, %v261
  %793 = vmatprep.subr.mxu0 %v792
  %v794 = vsub.f32 %v260, %v260
  %795 = vmatpush1.msra.mxu0 %v794
  %v796 = vsub.f32 %v263, %v263
  %797 = vmatprep.subr.mxu0 %v796
  %v798 = vsub.f32 %v262, %v262
  %799 = vmatpush1.msra.mxu0 %v798
  %v800 = vsub.f32 %v265, %v265
  %801 = vmatprep.subr.mxu0 %v800
  %v802 = vsub.f32 %v264, %v264
  %803 = vmatpush1.msra.mxu0 %v802
  %v804 = vsub.f32 %v267, %v267
  %805 = vmatprep.subr.mxu0 %v804
  %v806 = vsub.f32 %v266, %v266
  %807 = vmatpush1.msra.mxu0 %v806
  %v808 = vand.u32 %v269, 4294901760
  %v809 = vsub.f32 %v269, %v808
  %810 = vmatprep.mubr.f32.mxu0 %v809
  %v811 = vand.u32 %v268, 4294901760
  %v812 = vsub.f32 %v268, %v811
  %813 = vmatmul.mubr.f32.gmra.mrb[0].mxu0 %v812
  %v814 = vpop.f32.mrb[0].mxu0
  %v815 = vadd.f32 %v676, %v814
  %v816 = vpop.f32.mrb[0].mxu0
  %v817 = vadd.f32 %v678, %v816
  %818 = vdwg.mxu0
  %819 = vmatprep.subr.mxu0 %v205
  %820 = vmatpush1.msra.mxu0 %v204
  %821 = vmatprep.subr.mxu0 %v207
  %822 = vmatpush1.msra.mxu0 %v206
  %823 = vmatprep.subr.mxu0 %v209
  %824 = vmatpush1.msra.mxu0 %v208
  %825 = vmatprep.subr.mxu0 %v211
  %826 = vmatpush1.msra.mxu0 %v210
  %827 = vmatprep.subr.mxu0 %v213
  %828 = vmatpush1.msra.mxu0 %v212
  %829 = vmatprep.subr.mxu0 %v215
  %830 = vmatpush1.msra.mxu0 %v214
  %831 = vmatprep.subr.mxu0 %v217
  %832 = vmatpush1.msra.mxu0 %v216
  %833 = vmatprep.subr.mxu0 %v219
  %834 = vmatpush1.msra.mxu0 %v218
  %835 = vmatprep.subr.mxu0 %v221
  %836 = vmatpush1.msra.mxu0 %v220
  %837 = vmatprep.subr.mxu0 %v223
  %838 = vmatpush1.msra.mxu0 %v222
  %839 = vmatprep.subr.mxu0 %v225
  %840 = vmatpush1.msra.mxu0 %v224
  %841 = vmatprep.subr.mxu0 %v227
  %842 = vmatpush1.msra.mxu0 %v226
  %843 = vmatprep.subr.mxu0 %v229
  %844 = vmatpush1.msra.mxu0 %v228
  %845 = vmatprep.subr.mxu0 %v231
  %846 = vmatpush1.msra.mxu0 %v230
  %847 = vmatprep.subr.mxu0 %v233
  %848 = vmatpush1.msra.mxu0 %v232
  %849 = vmatprep.subr.mxu0 %v235
  %850 = vmatpush1.msra.mxu0 %v234
  %851 = vmatprep.subr.mxu0 %v237
  %852 = vmatpush1.msra.mxu0 %v236
  %853 = vmatprep.subr.mxu0 %v239
  %854 = vmatpush1.msra.mxu0 %v238
  %855 = vmatprep.subr.mxu0 %v241
  %856 = vmatpush1.msra.mxu0 %v240
  %857 = vmatprep.subr.mxu0 %v243
  %858 = vmatpush1.msra.mxu0 %v242
  %859 = vmatprep.subr.mxu0 %v245
  %860 = vmatpush1.msra.mxu0 %v244
  %861 = vmatprep.subr.mxu0 %v247
  %862 = vmatpush1.msra.mxu0 %v246
  %863 = vmatprep.subr.mxu0 %v249
  %864 = vmatpush1.msra.mxu0 %v248
  %865 = vmatprep.subr.mxu0 %v251
  %866 = vmatpush1.msra.mxu0 %v250
  %867 = vmatprep.subr.mxu0 %v253
  %868 = vmatpush1.msra.mxu0 %v252
  %869 = vmatprep.subr.mxu0 %v255
  %870 = vmatpush1.msra.mxu0 %v254
  %871 = vmatprep.subr.mxu0 %v257
  %872 = vmatpush1.msra.mxu0 %v256
  %873 = vmatprep.subr.mxu0 %v259
  %874 = vmatpush1.msra.mxu0 %v258
  %875 = vmatprep.subr.mxu0 %v261
  %876 = vmatpush1.msra.mxu0 %v260
  %877 = vmatprep.subr.mxu0 %v263
  %878 = vmatpush1.msra.mxu0 %v262
  %879 = vmatprep.subr.mxu0 %v265
  %880 = vmatpush1.msra.mxu0 %v264
  %881 = vmatprep.subr.mxu0 %v267
  %882 = vmatpush1.msra.mxu0 %v266
  %v883 = vand.u32 %v269, 4294901760
  %v884 = vsub.f32 %v269, %v883
  %v885 = vand.u32 %v884, 4294901760
  %886 = vmatprep.mubr.f32.mxu0 %v885
  %v887 = vand.u32 %v268, 4294901760
  %v888 = vsub.f32 %v268, %v887
  %v889 = vand.u32 %v888, 4294901760
  %890 = vmatmul.mubr.f32.gmra.mrb[0].mxu0 %v889
  %v891 = vpop.f32.mrb[0].mxu0
  %v892 = vadd.f32 %v815, %v891
  %v893 = vpop.f32.mrb[0].mxu0
  %v894 = vadd.f32 %v817, %v893
  %895 = vdwg.mxu0
  %v896 = vsub.f32 %v205, %v205
  %v897 = vand.u32 %v896, 4294901760
  %898 = vmatprep.subr.mxu0 %v897
  %v899 = vsub.f32 %v204, %v204
  %v900 = vand.u32 %v899, 4294901760
  %901 = vmatpush1.msra.mxu0 %v900
  %v902 = vsub.f32 %v207, %v207
  %v903 = vand.u32 %v902, 4294901760
  %904 = vmatprep.subr.mxu0 %v903
  %v905 = vsub.f32 %v206, %v206
  %v906 = vand.u32 %v905, 4294901760
  %907 = vmatpush1.msra.mxu0 %v906
  %v908 = vsub.f32 %v209, %v209
  %v909 = vand.u32 %v908, 4294901760
  %910 = vmatprep.subr.mxu0 %v909
  %v911 = vsub.f32 %v208, %v208
  %v912 = vand.u32 %v911, 4294901760
  %913 = vmatpush1.msra.mxu0 %v912
  %v914 = vsub.f32 %v211, %v211
  %v915 = vand.u32 %v914, 4294901760
  %916 = vmatprep.subr.mxu0 %v915
  %v917 = vsub.f32 %v210, %v210
  %v918 = vand.u32 %v917, 4294901760
  %919 = vmatpush1.msra.mxu0 %v918
  %v920 = vsub.f32 %v213, %v213
  %v921 = vand.u32 %v920, 4294901760
  %922 = vmatprep.subr.mxu0 %v921
  %v923 = vsub.f32 %v212, %v212
  %v924 = vand.u32 %v923, 4294901760
  %925 = vmatpush1.msra.mxu0 %v924
  %v926 = vsub.f32 %v215, %v215
  %v927 = vand.u32 %v926, 4294901760
  %928 = vmatprep.subr.mxu0 %v927
  %v929 = vsub.f32 %v214, %v214
  %v930 = vand.u32 %v929, 4294901760
  %931 = vmatpush1.msra.mxu0 %v930
  %v932 = vsub.f32 %v217, %v217
  %v933 = vand.u32 %v932, 4294901760
  %934 = vmatprep.subr.mxu0 %v933
  %v935 = vsub.f32 %v216, %v216
  %v936 = vand.u32 %v935, 4294901760
  %937 = vmatpush1.msra.mxu0 %v936
  %v938 = vsub.f32 %v219, %v219
  %v939 = vand.u32 %v938, 4294901760
  %940 = vmatprep.subr.mxu0 %v939
  %v941 = vsub.f32 %v218, %v218
  %v942 = vand.u32 %v941, 4294901760
  %943 = vmatpush1.msra.mxu0 %v942
  %v944 = vsub.f32 %v221, %v221
  %v945 = vand.u32 %v944, 4294901760
  %946 = vmatprep.subr.mxu0 %v945
  %v947 = vsub.f32 %v220, %v220
  %v948 = vand.u32 %v947, 4294901760
  %949 = vmatpush1.msra.mxu0 %v948
  %v950 = vsub.f32 %v223, %v223
  %v951 = vand.u32 %v950, 4294901760
  %952 = vmatprep.subr.mxu0 %v951
  %v953 = vsub.f32 %v222, %v222
  %v954 = vand.u32 %v953, 4294901760
  %955 = vmatpush1.msra.mxu0 %v954
  %v956 = vsub.f32 %v225, %v225
  %v957 = vand.u32 %v956, 4294901760
  %958 = vmatprep.subr.mxu0 %v957
  %v959 = vsub.f32 %v224, %v224
  %v960 = vand.u32 %v959, 4294901760
  %961 = vmatpush1.msra.mxu0 %v960
  %v962 = vsub.f32 %v227, %v227
  %v963 = vand.u32 %v962, 4294901760
  %964 = vmatprep.subr.mxu0 %v963
  %v965 = vsub.f32 %v226, %v226
  %v966 = vand.u32 %v965, 4294901760
  %967 = vmatpush1.msra.mxu0 %v966
  %v968 = vsub.f32 %v229, %v229
  %v969 = vand.u32 %v968, 4294901760
  %970 = vmatprep.subr.mxu0 %v969
  %v971 = vsub.f32 %v228, %v228
  %v972 = vand.u32 %v971, 4294901760
  %973 = vmatpush1.msra.mxu0 %v972
  %v974 = vsub.f32 %v231, %v231
  %v975 = vand.u32 %v974, 4294901760
  %976 = vmatprep.subr.mxu0 %v975
  %v977 = vsub.f32 %v230, %v230
  %v978 = vand.u32 %v977, 4294901760
  %979 = vmatpush1.msra.mxu0 %v978
  %v980 = vsub.f32 %v233, %v233
  %v981 = vand.u32 %v980, 4294901760
  %982 = vmatprep.subr.mxu0 %v981
  %v983 = vsub.f32 %v232, %v232
  %v984 = vand.u32 %v983, 4294901760
  %985 = vmatpush1.msra.mxu0 %v984
  %v986 = vsub.f32 %v235, %v235
  %v987 = vand.u32 %v986, 4294901760
  %988 = vmatprep.subr.mxu0 %v987
  %v989 = vsub.f32 %v234, %v234
  %v990 = vand.u32 %v989, 4294901760
  %991 = vmatpush1.msra.mxu0 %v990
  %v992 = vsub.f32 %v237, %v237
  %v993 = vand.u32 %v992, 4294901760
  %994 = vmatprep.subr.mxu0 %v993
  %v995 = vsub.f32 %v236, %v236
  %v996 = vand.u32 %v995, 4294901760
  %997 = vmatpush1.msra.mxu0 %v996
  %v998 = vsub.f32 %v239, %v239
  %v999 = vand.u32 %v998, 4294901760
  %1000 = vmatprep.subr.mxu0 %v999
  %v1001 = vsub.f32 %v238, %v238
  %v1002 = vand.u32 %v1001, 4294901760
  %1003 = vmatpush1.msra.mxu0 %v1002
  %v1004 = vsub.f32 %v241, %v241
  %v1005 = vand.u32 %v1004, 4294901760
  %1006 = vmatprep.subr.mxu0 %v1005
  %v1007 = vsub.f32 %v240, %v240
  %v1008 = vand.u32 %v1007, 4294901760
  %1009 = vmatpush1.msra.mxu0 %v1008
  %v1010 = vsub.f32 %v243, %v243
  %v1011 = vand.u32 %v1010, 4294901760
  %1012 = vmatprep.subr.mxu0 %v1011
  %v1013 = vsub.f32 %v242, %v242
  %v1014 = vand.u32 %v1013, 4294901760
  %1015 = vmatpush1.msra.mxu0 %v1014
  %v1016 = vsub.f32 %v245, %v245
  %v1017 = vand.u32 %v1016, 4294901760
  %1018 = vmatprep.subr.mxu0 %v1017
  %v1019 = vsub.f32 %v244, %v244
  %v1020 = vand.u32 %v1019, 4294901760
  %1021 = vmatpush1.msra.mxu0 %v1020
  %v1022 = vsub.f32 %v247, %v247
  %v1023 = vand.u32 %v1022, 4294901760
  %1024 = vmatprep.subr.mxu0 %v1023
  %v1025 = vsub.f32 %v246, %v246
  %v1026 = vand.u32 %v1025, 4294901760
  %1027 = vmatpush1.msra.mxu0 %v1026
  %v1028 = vsub.f32 %v249, %v249
  %v1029 = vand.u32 %v1028, 4294901760
  %1030 = vmatprep.subr.mxu0 %v1029
  %v1031 = vsub.f32 %v248, %v248
  %v1032 = vand.u32 %v1031, 4294901760
  %1033 = vmatpush1.msra.mxu0 %v1032
  %v1034 = vsub.f32 %v251, %v251
  %v1035 = vand.u32 %v1034, 4294901760
  %1036 = vmatprep.subr.mxu0 %v1035
  %v1037 = vsub.f32 %v250, %v250
  %v1038 = vand.u32 %v1037, 4294901760
  %1039 = vmatpush1.msra.mxu0 %v1038
  %v1040 = vsub.f32 %v253, %v253
  %v1041 = vand.u32 %v1040, 4294901760
  %1042 = vmatprep.subr.mxu0 %v1041
  %v1043 = vsub.f32 %v252, %v252
  %v1044 = vand.u32 %v1043, 4294901760
  %1045 = vmatpush1.msra.mxu0 %v1044
  %v1046 = vsub.f32 %v255, %v255
  %v1047 = vand.u32 %v1046, 4294901760
  %1048 = vmatprep.subr.mxu0 %v1047
  %v1049 = vsub.f32 %v254, %v254
  %v1050 = vand.u32 %v1049, 4294901760
  %1051 = vmatpush1.msra.mxu0 %v1050
  %v1052 = vsub.f32 %v257, %v257
  %v1053 = vand.u32 %v1052, 4294901760
  %1054 = vmatprep.subr.mxu0 %v1053
  %v1055 = vsub.f32 %v256, %v256
  %v1056 = vand.u32 %v1055, 4294901760
  %1057 = vmatpush1.msra.mxu0 %v1056
  %v1058 = vsub.f32 %v259, %v259
  %v1059 = vand.u32 %v1058, 4294901760
  %1060 = vmatprep.subr.mxu0 %v1059
  %v1061 = vsub.f32 %v258, %v258
  %v1062 = vand.u32 %v1061, 4294901760
  %1063 = vmatpush1.msra.mxu0 %v1062
  %v1064 = vsub.f32 %v261, %v261
  %v1065 = vand.u32 %v1064, 4294901760
  %1066 = vmatprep.subr.mxu0 %v1065
  %v1067 = vsub.f32 %v260, %v260
  %v1068 = vand.u32 %v1067, 4294901760
  %1069 = vmatpush1.msra.mxu0 %v1068
  %v1070 = vsub.f32 %v263, %v263
  %v1071 = vand.u32 %v1070, 4294901760
  %1072 = vmatprep.subr.mxu0 %v1071
  %v1073 = vsub.f32 %v262, %v262
  %v1074 = vand.u32 %v1073, 4294901760
  %1075 = vmatpush1.msra.mxu0 %v1074
  %v1076 = vsub.f32 %v265, %v265
  %v1077 = vand.u32 %v1076, 4294901760
  %1078 = vmatprep.subr.mxu0 %v1077
  %v1079 = vsub.f32 %v264, %v264
  %v1080 = vand.u32 %v1079, 4294901760
  %1081 = vmatpush1.msra.mxu0 %v1080
  %v1082 = vsub.f32 %v267, %v267
  %v1083 = vand.u32 %v1082, 4294901760
  %1084 = vmatprep.subr.mxu0 %v1083
  %v1085 = vsub.f32 %v266, %v266
  %v1086 = vand.u32 %v1085, 4294901760
  %1087 = vmatpush1.msra.mxu0 %v1086
  %v1088 = vand.u32 %v269, 4294901760
  %1089 = vmatprep.mubr.f32.mxu0 %v1088
  %v1090 = vand.u32 %v268, 4294901760
  %1091 = vmatmul.mubr.f32.gmra.mrb[0].mxu0 %v1090
  %v1092 = vpop.f32.mrb[0].mxu0
  %v1093 = vadd.f32 %v892, %v1092
  %v1094 = vpop.f32.mrb[0].mxu0
  %v1095 = vadd.f32 %v894, %v1094
  %1096 = vdwg.mxu0
  %1097 = vmatprep.subr.mxu0 %v205
  %1098 = vmatpush1.msra.mxu0 %v204
  %1099 = vmatprep.subr.mxu0 %v207
  %1100 = vmatpush1.msra.mxu0 %v206
  %1101 = vmatprep.subr.mxu0 %v209
  %1102 = vmatpush1.msra.mxu0 %v208
  %1103 = vmatprep.subr.mxu0 %v211
  %1104 = vmatpush1.msra.mxu0 %v210
  %1105 = vmatprep.subr.mxu0 %v213
  %1106 = vmatpush1.msra.mxu0 %v212
  %1107 = vmatprep.subr.mxu0 %v215
  %1108 = vmatpush1.msra.mxu0 %v214
  %1109 = vmatprep.subr.mxu0 %v217
  %1110 = vmatpush1.msra.mxu0 %v216
  %1111 = vmatprep.subr.mxu0 %v219
  %1112 = vmatpush1.msra.mxu0 %v218
  %1113 = vmatprep.subr.mxu0 %v221
  %1114 = vmatpush1.msra.mxu0 %v220
  %1115 = vmatprep.subr.mxu0 %v223
  %1116 = vmatpush1.msra.mxu0 %v222
  %1117 = vmatprep.subr.mxu0 %v225
  %1118 = vmatpush1.msra.mxu0 %v224
  %1119 = vmatprep.subr.mxu0 %v227
  %1120 = vmatpush1.msra.mxu0 %v226
  %1121 = vmatprep.subr.mxu0 %v229
  %1122 = vmatpush1.msra.mxu0 %v228
  %1123 = vmatprep.subr.mxu0 %v231
  %1124 = vmatpush1.msra.mxu0 %v230
  %1125 = vmatprep.subr.mxu0 %v233
  %1126 = vmatpush1.msra.mxu0 %v232
  %1127 = vmatprep.subr.mxu0 %v235
  %1128 = vmatpush1.msra.mxu0 %v234
  %1129 = vmatprep.subr.mxu0 %v237
  %1130 = vmatpush1.msra.mxu0 %v236
  %1131 = vmatprep.subr.mxu0 %v239
  %1132 = vmatpush1.msra.mxu0 %v238
  %1133 = vmatprep.subr.mxu0 %v241
  %1134 = vmatpush1.msra.mxu0 %v240
  %1135 = vmatprep.subr.mxu0 %v243
  %1136 = vmatpush1.msra.mxu0 %v242
  %1137 = vmatprep.subr.mxu0 %v245
  %1138 = vmatpush1.msra.mxu0 %v244
  %1139 = vmatprep.subr.mxu0 %v247
  %1140 = vmatpush1.msra.mxu0 %v246
  %1141 = vmatprep.subr.mxu0 %v249
  %1142 = vmatpush1.msra.mxu0 %v248
  %1143 = vmatprep.subr.mxu0 %v251
  %1144 = vmatpush1.msra.mxu0 %v250
  %1145 = vmatprep.subr.mxu0 %v253
  %1146 = vmatpush1.msra.mxu0 %v252
  %1147 = vmatprep.subr.mxu0 %v255
  %1148 = vmatpush1.msra.mxu0 %v254
  %1149 = vmatprep.subr.mxu0 %v257
  %1150 = vmatpush1.msra.mxu0 %v256
  %1151 = vmatprep.subr.mxu0 %v259
  %1152 = vmatpush1.msra.mxu0 %v258
  %1153 = vmatprep.subr.mxu0 %v261
  %1154 = vmatpush1.msra.mxu0 %v260
  %1155 = vmatprep.subr.mxu0 %v263
  %1156 = vmatpush1.msra.mxu0 %v262
  %1157 = vmatprep.subr.mxu0 %v265
  %1158 = vmatpush1.msra.mxu0 %v264
  %1159 = vmatprep.subr.mxu0 %v267
  %1160 = vmatpush1.msra.mxu0 %v266
  %v1161 = vand.u32 %v269, 4294901760
  %1162 = vmatprep.mubr.f32.mxu0 %v1161
  %v1163 = vand.u32 %v268, 4294901760
  %1164 = vmatmul.mubr.f32.gmra.mrb[0].mxu0 %v1163
  %v1165 = vpop.f32.mrb[0].mxu0
  %v1166 = vadd.f32 %v1093, %v1165
  %v1167 = vpop.f32.mrb[0].mxu0
  %v1168 = vadd.f32 %v1095, %v1167
  %1169 = vdwg.mxu0
  %1170 = vst [vmem:[%s4] sm:$0xff] %v1166
  %1171 = vst [vmem:[%s4 + $0x8] sm:$0xff] %v1168
  // Predicated region
  $region10: #{_rotate_padded_call.1} parent=0 // pred_check
    _
  $region11: #{_rotate_padded_call.1} parent=0 // pred_check_branch
    %1173 = sbr.rel (0) target = $region13
  $region12: #{_rotate_padded_call.1} parent=0 // pred_region
    _
  $region13: #{_rotate_padded_call.1} parent=0 // pred_fallthru
    _
  // Predicated region
  $region14: #{_rotate_padded_call.1} parent=0 // pred_check
    _
  $region15: #{_rotate_padded_call.1} parent=0 // pred_check_branch
    %1175 = sbr.rel (0) target = $region17
  $region16: #{_rotate_padded_call.1} parent=0 // pred_region
    _
  $region17: #{_rotate_padded_call.1} parent=0 // pred_fallthru
    _

</llo_original>
